<compile_context>
chip_gen: v7x
topology: tpu7x:2x2x1
jax: 0.10.0
libtpu: 0.0.40
codegen_flags: <defaults>
</compile_context>

<pallas_src>
import math

import jax
import jax.numpy as jnp
from jax.experimental import pallas as pl
from jax.experimental.pallas import tpu as pltpu


# ----------------------------- Pallas kernels ------------------------------

def _se_ftr_kernel(x_ref, w_ref, s_ref, b_ref, w1t_ref, w2_ref, o_ref):
    """Fused 1x1conv + BN(eval) + ReLU + global-avg-pool + SE MLP + gate.

    x_ref:  (1, Cin, S)   w_ref: (Cout, Cin)   s_ref/b_ref: (Cout, 1)
    w1t_ref:(Cout, Hid)   w2_ref:(Cout, Hid)   o_ref: (1, Cout, S)
    """
    x = x_ref[0].astype(jnp.float32)                     # (Cin, S)
    w = w_ref[...]                                       # (Cout, Cin)
    cin = x.shape[0]

    # 1x1x1 conv == per-position channel mix: unrolled Cin-tap FMA (VPU), lane-dense (Cout, S).
    h = w[:, 0:1] * x[0:1, :]
    for ci in range(1, cin):
        h = h + w[:, ci:ci + 1] * x[ci:ci + 1, :]

    # Folded eval-mode BatchNorm3d + ReLU.
    h = jnp.maximum(h * s_ref[...] + b_ref[...], 0.0)    # (Cout, S)

    # AdaptiveAvgPool3d(1): mean over all spatial positions (lane reduce).
    y = jnp.mean(h, axis=1, keepdims=True)               # (Cout, 1)

    # SE excitation MLP (bias-free): relu(W1 @ y) then sigmoid(W2 @ mid).
    mid = jnp.maximum(jnp.sum(w1t_ref[...] * y, axis=0, keepdims=True), 0.0)   # (1, Hid)
    gate = jax.nn.sigmoid(jnp.sum(w2_ref[...] * mid, axis=1, keepdims=True))   # (Cout, 1)

    o_ref[0] = (h * gate).astype(o_ref.dtype)


def _se_noftr_kernel(x_ref, w1t_ref, w2_ref, o_ref):
    """Same as above but in_ch == out_ch (no f_tr branch)."""
    x = x_ref[0].astype(jnp.float32)                     # (C, S)
    y = jnp.mean(x, axis=1, keepdims=True)               # (C, 1)
    mid = jnp.maximum(jnp.sum(w1t_ref[...] * y, axis=0, keepdims=True), 0.0)   # (1, Hid)
    gate = jax.nn.sigmoid(jnp.sum(w2_ref[...] * mid, axis=1, keepdims=True))   # (C, 1)
    o_ref[0] = (x * gate).astype(o_ref.dtype)


# ------------------------------ JAX wrapper ---------------------------------

def se_block(x_ncdhw, params, *, in_ch, out_ch, reduction=2, eps=1e-5):
    """Pallas implementation of SEBlock.forward (eval mode). x, out are NCDHW."""
    B, C, D, H, W = x_ncdhw.shape
    assert C == in_ch
    S = D * H * W
    hid = out_ch // reduction

    # NCDHW flatten of DHW is contiguous -> free reshape to (B, C, S): channels on sublanes,
    # spatial on lanes (lane-dense, S is a multiple of 128 for the demo shapes).
    x3 = x_ncdhw.reshape(B, C, S).astype(jnp.float32)

    w1t = jnp.transpose(params["w1"]).astype(jnp.float32)     # (out_ch, hid)
    w2 = params["w2"].astype(jnp.float32)                     # (out_ch, hid)

    if in_ch != out_ch:
        w = params["w"].reshape(out_ch, in_ch).astype(jnp.float32)     # 1x1x1 conv weight
        scale = params["gamma"] / jnp.sqrt(params["var"] + eps)
        shift = params["beta"] - params["mean"] * scale
        s2 = scale.reshape(out_ch, 1).astype(jnp.float32)
        b2 = shift.reshape(out_ch, 1).astype(jnp.float32)

        out = pl.pallas_call(
            _se_ftr_kernel,
            out_shape=jax.ShapeDtypeStruct((B, out_ch, S), jnp.float32),
            grid=(B,),
            in_specs=[
                pl.BlockSpec((1, in_ch, S), lambda b: (b, 0, 0)),
                pl.BlockSpec((out_ch, in_ch), lambda b: (0, 0)),
                pl.BlockSpec((out_ch, 1), lambda b: (0, 0)),
                pl.BlockSpec((out_ch, 1), lambda b: (0, 0)),
                pl.BlockSpec((out_ch, hid), lambda b: (0, 0)),
                pl.BlockSpec((out_ch, hid), lambda b: (0, 0)),
            ],
            out_specs=pl.BlockSpec((1, out_ch, S), lambda b: (b, 0, 0)),
            compiler_params=pltpu.CompilerParams(
                dimension_semantics=("parallel",)),
        )(x3, w, s2, b2, w1t, w2)
    else:
        out = pl.pallas_call(
            _se_noftr_kernel,
            out_shape=jax.ShapeDtypeStruct((B, out_ch, S), jnp.float32),
            grid=(B,),
            in_specs=[
                pl.BlockSpec((1, out_ch, S), lambda b: (b, 0, 0)),
                pl.BlockSpec((out_ch, hid), lambda b: (0, 0)),
                pl.BlockSpec((out_ch, hid), lambda b: (0, 0)),
            ],
            out_specs=pl.BlockSpec((1, out_ch, S), lambda b: (b, 0, 0)),
            compiler_params=pltpu.CompilerParams(
                dimension_semantics=("parallel",)),
        )(x3, w1t, w2)

    return out.reshape(B, out_ch, D, H, W)


# -------------------------- pure-JAX reference -------------------------------

def _reference(x, params, in_ch, out_ch, eps=1e-5):
    if in_ch != out_ch:
        x = jax.lax.conv_general_dilated(
            x, params["w"], window_strides=(1, 1, 1), padding="VALID",
            dimension_numbers=("NCDHW", "OIDHW", "NCDHW"))
        scale = (params["gamma"] / jnp.sqrt(params["var"] + eps)).reshape(1, -1, 1, 1, 1)
        x = (x - params["mean"].reshape(1, -1, 1, 1, 1)) * scale \
            + params["beta"].reshape(1, -1, 1, 1, 1)
        x = jnp.maximum(x, 0.0)
    y = jnp.mean(x, axis=(2, 3, 4))                     # (B, C)
    mid = jnp.maximum(y @ params["w1"].T, 0.0)
    gate = jax.nn.sigmoid(mid @ params["w2"].T)
    return x * gate[:, :, None, None, None]


# --------------------------------- main --------------------------------------

if __name__ == "__main__":
    key = jax.random.PRNGKey(0)
    B, D, H, W = 2, 8, 8, 8
    in_ch, out_ch, reduction = 4, 8, 2
    hid = out_ch // reduction

    k = jax.random.split(key, 8)
    params = dict(
        # f_tr: Conv3d(in_ch, out_ch, 1, bias=False) + BatchNorm3d(out_ch) running stats
        w=jax.random.normal(k[0], (out_ch, in_ch, 1, 1, 1), jnp.float32) / math.sqrt(in_ch),
        gamma=jnp.abs(jax.random.normal(k[1], (out_ch,), jnp.float32)) + 0.5,
        beta=jax.random.normal(k[2], (out_ch,), jnp.float32) * 0.1,
        mean=jax.random.normal(k[3], (out_ch,), jnp.float32) * 0.1,
        var=jnp.abs(jax.random.normal(k[4], (out_ch,), jnp.float32)) * 0.5 + 0.5,
        # SE MLP: Linear(out_ch, hid, bias=False), Linear(hid, out_ch, bias=False)
        w1=jax.random.normal(k[5], (hid, out_ch), jnp.float32) / math.sqrt(out_ch),
        w2=jax.random.normal(k[6], (out_ch, hid), jnp.float32) / math.sqrt(hid),
    )

    # Path 1: in_ch != out_ch (f_tr branch active).
    x = jax.random.normal(k[7], (B, in_ch, D, H, W), jnp.float32)
    out = jax.jit(lambda xx: se_block(xx, params, in_ch=in_ch, out_ch=out_ch,
                                      reduction=reduction))(x)
    jax.block_until_ready(out)
    out_ref = _reference(x, params, in_ch, out_ch)
    assert out.shape == (B, out_ch, D, H, W)
    assert jnp.max(jnp.abs(out - out_ref)) < 1e-3, "SEBlock (f_tr path) mismatch"

    # Path 2: in_ch == out_ch (f_tr skipped).
    x2 = jax.random.normal(k[3], (B, out_ch, D, H, W), jnp.float32)
    out2 = jax.jit(lambda xx: se_block(xx, params, in_ch=out_ch, out_ch=out_ch,
                                       reduction=reduction))(x2)
    jax.block_until_ready(out2)
    out2_ref = _reference(x2, params, out_ch, out_ch)
    assert out2.shape == (B, out_ch, D, H, W)
    assert jnp.max(jnp.abs(out2 - out2_ref)) < 1e-3, "SEBlock (identity path) mismatch"

    print("KERNEL_OK")
</pallas_src>

<mosaic_0001>
module attributes {stable_mosaic.version = 11 : i64} {
  func.func @_se_ftr_kernel(%arg0: i32, %arg1: memref<1x4x512xf32, #tpu.memory_space<vmem>>, %arg2: memref<8x4xf32, #tpu.memory_space<vmem>>, %arg3: memref<8x1xf32, #tpu.memory_space<vmem>>, %arg4: memref<8x1xf32, #tpu.memory_space<vmem>>, %arg5: memref<8x4xf32, #tpu.memory_space<vmem>>, %arg6: memref<8x4xf32, #tpu.memory_space<vmem>>, %arg7: memref<1x8x512xf32, #tpu.memory_space<vmem>>) attributes {dimension_semantics = [#tpu.dimension_semantics<parallel>], iteration_bounds = array<i64: 2>, scalar_prefetch = 0 : i64, scratch_operands = 0 : i64, tpu.core_type = #tpu.core_type<tc>, window_params = [{transform_indices = @transform_0, window_bounds = array<i64: 1, 4, 512>}, {pipeline_mode = #tpu.pipeline_mode<synchronous>, transform_indices = @transform_1, window_bounds = array<i64: 8, 4>}, {pipeline_mode = #tpu.pipeline_mode<synchronous>, transform_indices = @transform_2, window_bounds = array<i64: 8, 1>}, {pipeline_mode = #tpu.pipeline_mode<synchronous>, transform_indices = @transform_3, window_bounds = array<i64: 8, 1>}, {pipeline_mode = #tpu.pipeline_mode<synchronous>, transform_indices = @transform_4, window_bounds = array<i64: 8, 4>}, {pipeline_mode = #tpu.pipeline_mode<synchronous>, transform_indices = @transform_5, window_bounds = array<i64: 8, 4>}, {transform_indices = @transform_6, window_bounds = array<i64: 1, 8, 512>}]} {
    %c0 = arith.constant 0 : index
    %c0_0 = arith.constant 0 : index
    %c0_1 = arith.constant 0 : index
    %0 = vector.load %arg1[%c0, %c0_0, %c0_1] : memref<1x4x512xf32, #tpu.memory_space<vmem>>, vector<1x4x512xf32>
    %1 = vector.shape_cast %0 : vector<1x4x512xf32> to vector<4x512xf32>
    %c0_2 = arith.constant 0 : index
    %c0_3 = arith.constant 0 : index
    %2 = vector.load %arg2[%c0_2, %c0_3] : memref<8x4xf32, #tpu.memory_space<vmem>>, vector<8x4xf32>
    %3 = vector.extract_strided_slice %2 {offsets = [0, 0], sizes = [8, 1], strides = [1, 1]} : vector<8x4xf32> to vector<8x1xf32>
    %4 = vector.extract_strided_slice %1 {offsets = [0, 0], sizes = [1, 512], strides = [1, 1]} : vector<4x512xf32> to vector<1x512xf32>
    %5 = vector.broadcast %3 : vector<8x1xf32> to vector<8x512xf32>
    %6 = vector.broadcast %4 : vector<1x512xf32> to vector<8x512xf32>
    %7 = arith.mulf %5, %6 : vector<8x512xf32>
    %8 = vector.extract_strided_slice %2 {offsets = [0, 1], sizes = [8, 1], strides = [1, 1]} : vector<8x4xf32> to vector<8x1xf32>
    %9 = vector.extract_strided_slice %1 {offsets = [1, 0], sizes = [1, 512], strides = [1, 1]} : vector<4x512xf32> to vector<1x512xf32>
    %10 = vector.broadcast %8 : vector<8x1xf32> to vector<8x512xf32>
    %11 = vector.broadcast %9 : vector<1x512xf32> to vector<8x512xf32>
    %12 = arith.mulf %10, %11 : vector<8x512xf32>
    %13 = arith.addf %7, %12 : vector<8x512xf32>
    %14 = vector.extract_strided_slice %2 {offsets = [0, 2], sizes = [8, 1], strides = [1, 1]} : vector<8x4xf32> to vector<8x1xf32>
    %15 = vector.extract_strided_slice %1 {offsets = [2, 0], sizes = [1, 512], strides = [1, 1]} : vector<4x512xf32> to vector<1x512xf32>
    %16 = vector.broadcast %14 : vector<8x1xf32> to vector<8x512xf32>
    %17 = vector.broadcast %15 : vector<1x512xf32> to vector<8x512xf32>
    %18 = arith.mulf %16, %17 : vector<8x512xf32>
    %19 = arith.addf %13, %18 : vector<8x512xf32>
    %20 = vector.extract_strided_slice %2 {offsets = [0, 3], sizes = [8, 1], strides = [1, 1]} : vector<8x4xf32> to vector<8x1xf32>
    %21 = vector.extract_strided_slice %1 {offsets = [3, 0], sizes = [1, 512], strides = [1, 1]} : vector<4x512xf32> to vector<1x512xf32>
    %22 = vector.broadcast %20 : vector<8x1xf32> to vector<8x512xf32>
    %23 = vector.broadcast %21 : vector<1x512xf32> to vector<8x512xf32>
    %24 = arith.mulf %22, %23 : vector<8x512xf32>
    %25 = arith.addf %19, %24 : vector<8x512xf32>
    %c0_4 = arith.constant 0 : index
    %c0_5 = arith.constant 0 : index
    %26 = vector.load %arg3[%c0_4, %c0_5] : memref<8x1xf32, #tpu.memory_space<vmem>>, vector<8x1xf32>
    %27 = vector.broadcast %26 : vector<8x1xf32> to vector<8x512xf32>
    %28 = arith.mulf %25, %27 : vector<8x512xf32>
    %c0_6 = arith.constant 0 : index
    %c0_7 = arith.constant 0 : index
    %29 = vector.load %arg4[%c0_6, %c0_7] : memref<8x1xf32, #tpu.memory_space<vmem>>, vector<8x1xf32>
    %30 = vector.broadcast %29 : vector<8x1xf32> to vector<8x512xf32>
    %31 = arith.addf %28, %30 : vector<8x512xf32>
    %cst = arith.constant 0.000000e+00 : f32
    %32 = vector.broadcast %cst : f32 to vector<8x512xf32>
    %33 = arith.maximumf %31, %32 : vector<8x512xf32>
    %cst_8 = arith.constant dense<0.000000e+00> : vector<8xf32>
    %34 = vector.multi_reduction <add>, %33, %cst_8 [1] : vector<8x512xf32> to vector<8xf32>
    %35 = vector.shape_cast %34 : vector<8xf32> to vector<8x1xf32>
    %cst_9 = arith.constant 5.120000e+02 : f32
    %36 = vector.broadcast %cst_9 : f32 to vector<8x1xf32>
    %37 = arith.divf %35, %36 : vector<8x1xf32>
    %c0_10 = arith.constant 0 : index
    %c0_11 = arith.constant 0 : index
    %38 = vector.load %arg5[%c0_10, %c0_11] : memref<8x4xf32, #tpu.memory_space<vmem>>, vector<8x4xf32>
    %39 = vector.broadcast %37 : vector<8x1xf32> to vector<8x4xf32>
    %40 = arith.mulf %38, %39 : vector<8x4xf32>
    %cst_12 = arith.constant dense<0.000000e+00> : vector<4xf32>
    %41 = vector.multi_reduction <add>, %40, %cst_12 [0] : vector<8x4xf32> to vector<4xf32>
    %42 = vector.shape_cast %41 : vector<4xf32> to vector<1x4xf32>
    %cst_13 = arith.constant 0.000000e+00 : f32
    %43 = vector.broadcast %cst_13 : f32 to vector<1x4xf32>
    %44 = arith.maximumf %42, %43 : vector<1x4xf32>
    %c0_14 = arith.constant 0 : index
    %c0_15 = arith.constant 0 : index
    %45 = vector.load %arg6[%c0_14, %c0_15] : memref<8x4xf32, #tpu.memory_space<vmem>>, vector<8x4xf32>
    %46 = vector.broadcast %44 : vector<1x4xf32> to vector<8x4xf32>
    %47 = arith.mulf %45, %46 : vector<8x4xf32>
    %cst_16 = arith.constant dense<0.000000e+00> : vector<8xf32>
    %48 = vector.multi_reduction <add>, %47, %cst_16 [1] : vector<8x4xf32> to vector<8xf32>
    %49 = vector.shape_cast %48 : vector<8xf32> to vector<8x1xf32>
    %50 = arith.negf %49 : vector<8x1xf32>
    %51 = math.exp %50 : vector<8x1xf32>
    %cst_17 = arith.constant 1.000000e+00 : f32
    %52 = vector.broadcast %cst_17 : f32 to vector<8x1xf32>
    %53 = arith.addf %52, %51 : vector<8x1xf32>
    %54 = arith.divf %52, %53 : vector<8x1xf32>
    %55 = vector.broadcast %54 : vector<8x1xf32> to vector<8x512xf32>
    %56 = arith.mulf %33, %55 : vector<8x512xf32>
    %c0_18 = arith.constant 0 : index
    %c0_19 = arith.constant 0 : index
    %c0_20 = arith.constant 0 : index
    %57 = vector.load %arg7[%c0_18, %c0_19, %c0_20] : memref<1x8x512xf32, #tpu.memory_space<vmem>>, vector<1x8x512xf32>
    %58 = vector.shape_cast %57 : vector<1x8x512xf32> to vector<8x512xf32>
    %59 = vector.shape_cast %56 : vector<8x512xf32> to vector<1x8x512xf32>
    tpu.vector_store %arg7[%c0_18, %c0_19, %c0_20], %59 {strides = array<i32>} : memref<1x8x512xf32, #tpu.memory_space<vmem>>, vector<1x8x512xf32>,
    return
  }
  func.func @transform_0(%arg0: i32) -> (i32, i32, i32) {
    %c0_i32 = arith.constant 0 : i32
    %c0_i32_0 = arith.constant 0 : i32
    %c0_i32_1 = arith.constant 0 : i32
    return %arg0, %c0_i32, %c0_i32_0 : i32, i32, i32
  }
  func.func @transform_1(%arg0: i32) -> (i32, i32) {
    %c0_i32 = arith.constant 0 : i32
    %c0_i32_0 = arith.constant 0 : i32
    %c0_i32_1 = arith.constant 0 : i32
    return %c0_i32, %c0_i32_0 : i32, i32
  }
  func.func @transform_2(%arg0: i32) -> (i32, i32) {
    %c0_i32 = arith.constant 0 : i32
    %c0_i32_0 = arith.constant 0 : i32
    %c0_i32_1 = arith.constant 0 : i32
    return %c0_i32, %c0_i32_0 : i32, i32
  }
  func.func @transform_3(%arg0: i32) -> (i32, i32) {
    %c0_i32 = arith.constant 0 : i32
    %c0_i32_0 = arith.constant 0 : i32
    %c0_i32_1 = arith.constant 0 : i32
    return %c0_i32, %c0_i32_0 : i32, i32
  }
  func.func @transform_4(%arg0: i32) -> (i32, i32) {
    %c0_i32 = arith.constant 0 : i32
    %c0_i32_0 = arith.constant 0 : i32
    %c0_i32_1 = arith.constant 0 : i32
    return %c0_i32, %c0_i32_0 : i32, i32
  }
  func.func @transform_5(%arg0: i32) -> (i32, i32) {
    %c0_i32 = arith.constant 0 : i32
    %c0_i32_0 = arith.constant 0 : i32
    %c0_i32_1 = arith.constant 0 : i32
    return %c0_i32, %c0_i32_0 : i32, i32
  }
  func.func @transform_6(%arg0: i32) -> (i32, i32, i32) {
    %c0_i32 = arith.constant 0 : i32
    %c0_i32_0 = arith.constant 0 : i32
    %c0_i32_1 = arith.constant 0 : i32
    return %arg0, %c0_i32, %c0_i32_0 : i32, i32, i32
  }
}

</mosaic_0001>

<llo_original>
// kernel: _lambda_.1
$region0: #{_lambda_.1}
  #allocation0 [shape = 'u32[]', space=smem, size = 0x4, offset = 0x4, fixed_abs, tag = 'smem constant byte address 0x4 - core index']
  #allocation1 [shape = 'u32[144,128]{1,0:T(1,128)}', space=vmem, size = 0x12000, scoped, tag = 'internal scratch']
  %s0 = inlined_call_operand.vmem [shape: f32[2,4,512], index: 0, kind: input, shape index: {}]
  %s1 = inlined_call_operand.vmem [shape: f32[8,4], index: 1, kind: input, shape index: {}]
  %s2 = inlined_call_operand.vmem [shape: f32[8,1], index: 2, kind: input, shape index: {}]
  %s3 = inlined_call_operand.vmem [shape: f32[8,1], index: 3, kind: input, shape index: {}]
  %s4 = inlined_call_operand.vmem [shape: f32[8,4], index: 4, kind: input, shape index: {}]
  %s5 = inlined_call_operand.vmem [shape: f32[8,4], index: 5, kind: input, shape index: {}]
  %s6 = inlined_call_operand.vmem [shape: f32[2,8,512], index: 6, kind: output, shape index: {}]
  %s7 = sld [smem:[#allocation0]]
  $region57: #{_lambda_.1} parent=0
    _
  %s9 = ssub.s32 1, %s7
  %s10 = scalar_select 0, %s9, %s7
  loop: start=0, step=1, limit=4
  $region2: #{_lambda_.1} parent=0 // loop_pre_header
    _
  $region3: #{_lambda_.1} parent=0 // loop_header
    %s12 = sphi 0, %s16
    %p13 = scmp.ge.s32.totalorder %s12, 4
    %s22 = sphi 0, %s24
    %s25 = sphi 0, %s22
    %s26 = sphi 0, %s25
    %s42 = sphi 0, %s26
    %s46 = sphi 0, %s46
    %s48 = sphi 0, %s46
    %s49 = sphi 0, %s48
    %s63 = sphi 0, %s49
    %s67 = sphi 0, %s67
    %s69 = sphi 0, %s67
    %s70 = sphi 0, %s69
    %s84 = sphi 0, %s70
    %s88 = sphi 0, %s88
    %s90 = sphi 0, %s88
    %s91 = sphi 0, %s90
    %s105 = sphi 0, %s91
    %s109 = sphi 0, %s109
    %s111 = sphi 0, %s109
    %s112 = sphi 0, %s111
    %s126 = sphi 0, %s112
    %s130 = sphi 0, %s130
    %s132 = sphi 0, %s130
    %s133 = sphi 0, %s132
    %s147 = sphi 0, %s133
    %s153 = sphi 0, %s155
    %s156 = sphi 0, %s153
    %s157 = sphi 0, %s156
    %s173 = sphi 0, %s157
  $region4: #{_lambda_.1} parent=0 // loop_header_branch
    %15 = sbr.rel (%p13) target = $region8
  $region5: #{_lambda_.1} parent=0 // loop_body
    %s17 = ssub.s32 %s12, 1
    %s18 = ssub.s32 %s12, 2
    %s19 = sadd.s32 %s12, 1
    %s20 = ssub.s32 %s12, %s19
    %p21 = scmp.eq.s32.totalorder %s20, 0
    %s23 = sadd.s32 %s22, 1
    %s24 = scalar_select %p21, %s22, %s23
    %p27 = pneg %p21
    %p28 = scmp.eq.s32.totalorder %s12, 1
    %p29 = por %p27, %p28
    %p30 = scmp.ne.s32.totalorder %s22, %s25
    %p31 = scmp.eq.s32.totalorder %s12, 0
    %p32 = por %p30, %p31
    %p33 = scmp.ne.s32.totalorder %s22, %s25
    %p34 = scmp.eq.s32.totalorder %s17, 1
    %p35 = por %p33, %p34
    %p36 = scmp.ne.s32.totalorder %s25, %s26
    %p37 = scmp.eq.s32.totalorder %s17, 0
    %p38 = por %p36, %p37
    %p39 = scmp.ne.s32.totalorder %s25, %s26
    %p40 = scmp.eq.s32.totalorder %s18, 1
    %p41 = por %p39, %p40
    %p43 = scmp.ne.s32.totalorder %s26, %s42
    %p44 = scmp.eq.s32.totalorder %s18, 0
    %p45 = por %p43, %p44
    %s47 = sadd.s32 %s46, 1
    %p50 = scmp.eq.s32.totalorder %s12, 1
    %p51 = scmp.ne.s32.totalorder %s46, %s48
    %p52 = scmp.eq.s32.totalorder %s12, 0
    %p53 = por %p51, %p52
    %p54 = scmp.ne.s32.totalorder %s46, %s48
    %p55 = scmp.eq.s32.totalorder %s17, 1
    %p56 = por %p54, %p55
    %p57 = scmp.ne.s32.totalorder %s48, %s49
    %p58 = scmp.eq.s32.totalorder %s17, 0
    %p59 = por %p57, %p58
    %p60 = scmp.ne.s32.totalorder %s48, %s49
    %p61 = scmp.eq.s32.totalorder %s18, 1
    %p62 = por %p60, %p61
    %p64 = scmp.ne.s32.totalorder %s49, %s63
    %p65 = scmp.eq.s32.totalorder %s18, 0
    %p66 = por %p64, %p65
    %s68 = sadd.s32 %s67, 1
    %p71 = scmp.eq.s32.totalorder %s12, 1
    %p72 = scmp.ne.s32.totalorder %s67, %s69
    %p73 = scmp.eq.s32.totalorder %s12, 0
    %p74 = por %p72, %p73
    %p75 = scmp.ne.s32.totalorder %s67, %s69
    %p76 = scmp.eq.s32.totalorder %s17, 1
    %p77 = por %p75, %p76
    %p78 = scmp.ne.s32.totalorder %s69, %s70
    %p79 = scmp.eq.s32.totalorder %s17, 0
    %p80 = por %p78, %p79
    %p81 = scmp.ne.s32.totalorder %s69, %s70
    %p82 = scmp.eq.s32.totalorder %s18, 1
    %p83 = por %p81, %p82
    %p85 = scmp.ne.s32.totalorder %s70, %s84
    %p86 = scmp.eq.s32.totalorder %s18, 0
    %p87 = por %p85, %p86
    %s89 = sadd.s32 %s88, 1
    %p92 = scmp.eq.s32.totalorder %s12, 1
    %p93 = scmp.ne.s32.totalorder %s88, %s90
    %p94 = scmp.eq.s32.totalorder %s12, 0
    %p95 = por %p93, %p94
    %p96 = scmp.ne.s32.totalorder %s88, %s90
    %p97 = scmp.eq.s32.totalorder %s17, 1
    %p98 = por %p96, %p97
    %p99 = scmp.ne.s32.totalorder %s90, %s91
    %p100 = scmp.eq.s32.totalorder %s17, 0
    %p101 = por %p99, %p100
    %p102 = scmp.ne.s32.totalorder %s90, %s91
    %p103 = scmp.eq.s32.totalorder %s18, 1
    %p104 = por %p102, %p103
    %p106 = scmp.ne.s32.totalorder %s91, %s105
    %p107 = scmp.eq.s32.totalorder %s18, 0
    %p108 = por %p106, %p107
    %s110 = sadd.s32 %s109, 1
    %p113 = scmp.eq.s32.totalorder %s12, 1
    %p114 = scmp.ne.s32.totalorder %s109, %s111
    %p115 = scmp.eq.s32.totalorder %s12, 0
    %p116 = por %p114, %p115
    %p117 = scmp.ne.s32.totalorder %s109, %s111
    %p118 = scmp.eq.s32.totalorder %s17, 1
    %p119 = por %p117, %p118
    %p120 = scmp.ne.s32.totalorder %s111, %s112
    %p121 = scmp.eq.s32.totalorder %s17, 0
    %p122 = por %p120, %p121
    %p123 = scmp.ne.s32.totalorder %s111, %s112
    %p124 = scmp.eq.s32.totalorder %s18, 1
    %p125 = por %p123, %p124
    %p127 = scmp.ne.s32.totalorder %s112, %s126
    %p128 = scmp.eq.s32.totalorder %s18, 0
    %p129 = por %p127, %p128
    %s131 = sadd.s32 %s130, 1
    %p134 = scmp.eq.s32.totalorder %s12, 1
    %p135 = scmp.ne.s32.totalorder %s130, %s132
    %p136 = scmp.eq.s32.totalorder %s12, 0
    %p137 = por %p135, %p136
    %p138 = scmp.ne.s32.totalorder %s130, %s132
    %p139 = scmp.eq.s32.totalorder %s17, 1
    %p140 = por %p138, %p139
    %p141 = scmp.ne.s32.totalorder %s132, %s133
    %p142 = scmp.eq.s32.totalorder %s17, 0
    %p143 = por %p141, %p142
    %p144 = scmp.ne.s32.totalorder %s132, %s133
    %p145 = scmp.eq.s32.totalorder %s18, 1
    %p146 = por %p144, %p145
    %p148 = scmp.ne.s32.totalorder %s133, %s147
    %p149 = scmp.eq.s32.totalorder %s18, 0
    %p150 = por %p148, %p149
    %s151 = ssub.s32 %s12, %s19
    %p152 = scmp.eq.s32.totalorder %s151, 0
    %s154 = sadd.s32 %s153, 1
    %s155 = scalar_select %p152, %s153, %s154
    %p158 = pneg %p152
    %p159 = scmp.eq.s32.totalorder %s12, 1
    %p160 = por %p158, %p159
    %p161 = scmp.ne.s32.totalorder %s153, %s156
    %p162 = scmp.eq.s32.totalorder %s12, 0
    %p163 = por %p161, %p162
    %p164 = scmp.ne.s32.totalorder %s153, %s156
    %p165 = scmp.eq.s32.totalorder %s17, 1
    %p166 = por %p164, %p165
    %p167 = scmp.ne.s32.totalorder %s156, %s157
    %p168 = scmp.eq.s32.totalorder %s17, 0
    %p169 = por %p167, %p168
    %p170 = scmp.ne.s32.totalorder %s156, %s157
    %p171 = scmp.eq.s32.totalorder %s18, 1
    %p172 = por %p170, %p171
    %p174 = scmp.ne.s32.totalorder %s157, %s173
    %p175 = scmp.eq.s32.totalorder %s18, 0
    %p176 = por %p174, %p175
    %p177 = scmp.le.s32.totalorder 1, %s12
    %p178 = scmp.lt.s32.totalorder %s12, 3
    %p179 = pnand %p177, %p178
    %p180 = pneg %p179
    // Predicated region
    $region9: #{_lambda_.1} parent=5 // pred_check
      _
    $region10: #{_lambda_.1} parent=5 // pred_check_branch
      %182 = sbr.rel (%p179) target = $region12
    $region11: #{_lambda_.1} parent=5 // pred_region
      %s183 = ssub.s32 %s12, 1
      // Predicated region
      $region13: #{_lambda_.1} parent=11 // pred_check
        %p184 = pneg %p59
      $region14: #{_lambda_.1} parent=11 // pred_check_branch
        %186 = sbr.rel (%p184) target = $region16
      $region15: #{_lambda_.1} parent=11 // pred_region
        _
      $region16: #{_lambda_.1} parent=11 // pred_fallthru
        _
      // Predicated region
      $region17: #{_lambda_.1} parent=11 // pred_check
        %p187 = pneg %p80
      $region18: #{_lambda_.1} parent=11 // pred_check_branch
        %189 = sbr.rel (%p187) target = $region20
      $region19: #{_lambda_.1} parent=11 // pred_region
        _
      $region20: #{_lambda_.1} parent=11 // pred_fallthru
        _
      // Predicated region
      $region21: #{_lambda_.1} parent=11 // pred_check
        %p190 = pneg %p101
      $region22: #{_lambda_.1} parent=11 // pred_check_branch
        %192 = sbr.rel (%p190) target = $region24
      $region23: #{_lambda_.1} parent=11 // pred_region
        _
      $region24: #{_lambda_.1} parent=11 // pred_fallthru
        _
      // Predicated region
      $region25: #{_lambda_.1} parent=11 // pred_check
        %p193 = pneg %p122
      $region26: #{_lambda_.1} parent=11 // pred_check_branch
        %195 = sbr.rel (%p193) target = $region28
      $region27: #{_lambda_.1} parent=11 // pred_region
        _
      $region28: #{_lambda_.1} parent=11 // pred_fallthru
        _
      // Predicated region
      $region29: #{_lambda_.1} parent=11 // pred_check
        %p196 = pneg %p143
      $region30: #{_lambda_.1} parent=11 // pred_check_branch
        %198 = sbr.rel (%p196) target = $region32
      $region31: #{_lambda_.1} parent=11 // pred_region
        _
      $region32: #{_lambda_.1} parent=11 // pred_fallthru
        _
    $region12: #{_lambda_.1} parent=5 // pred_fallthru
      _
    %p199 = scmp.lt.s32.totalorder %s12, 2
    // Predicated region
    $region33: #{_lambda_.1} parent=5 // pred_check
      %p200 = pneg %p199
    $region34: #{_lambda_.1} parent=5 // pred_check_branch
      %202 = sbr.rel (%p200) target = $region36
    $region35: #{_lambda_.1} parent=5 // pred_region
      // Predicated region
      $region37: #{_lambda_.1} parent=35 // pred_check
        %p203 = pneg %p32
      $region38: #{_lambda_.1} parent=35 // pred_check_branch
        %205 = sbr.rel (%p203) target = $region40
      $region39: #{_lambda_.1} parent=35 // pred_region
        %p206 = scmp.lt.s32.totalorder %s12, 1
        %s207 = scalar_select %p206, %s12, 1
        %s208 = smul.addr %s207, 4
        %s209 = smul.addr %s208, 4
        %s210 = scalar_lea.vmem %s0, %s209
      $region40: #{_lambda_.1} parent=35 // pred_fallthru
        _
    $region36: #{_lambda_.1} parent=5 // pred_fallthru
      _
    %p211 = scmp.le.s32.totalorder 1, %s12
    %p212 = scmp.lt.s32.totalorder %s12, 3
    %p213 = pnand %p211, %p212
    %p214 = pneg %p213
    // Predicated region
    $region41: #{_lambda_.1} parent=5 // pred_check
      _
    $region42: #{_lambda_.1} parent=5 // pred_check_branch
      %216 = sbr.rel (%p213) target = $region44
    $region43: #{_lambda_.1} parent=5 // pred_region
      %s217 = ssub.s32 %s12, 1
      %p218 = scmp.lt.s32.totalorder %s17, 1
      %s219 = scalar_select %p218, %s17, 1
      %s220 = smul.addr %s219, 4
      %s221 = smul.addr %s220, 4
      %s222 = scalar_lea.vmem %s0, %s221
      %p223 = pneg %p38
      %p224 = pneg %p35
      %p225 = pneg %p59
      %p226 = pneg %p56
      %p227 = pneg %p80
      %p228 = pneg %p77
      %p229 = pneg %p101
      %p230 = pneg %p98
      %p231 = pneg %p122
      %p232 = pneg %p119
      %p233 = pneg %p143
      %p234 = pneg %p140
      %p235 = pneg %p169
      %p236 = pneg %p166
      %p237 = scmp.lt.s32.totalorder %s17, 1
      %s238 = scalar_select %p237, %s17, 1
      %s239 = smul.addr %s238, 4
      %s240 = smul.addr %s239, 8
      %s241 = scalar_lea.vmem %s6, %s240
      %p242 = scmp.lt.s32.totalorder %s17, 1
      %s243 = scalar_select %p242, %s17, 1
      %s244 = smul.addr %s243, 4
      %s245 = smul.addr %s244, 4
      %s246 = scalar_lea.vmem %s0, %s245
      %p247 = scmp.lt.s32.totalorder %s17, 1
      %s248 = scalar_select %p247, %s17, 1
      %s249 = smul.addr %s248, 4
      %s250 = smul.addr %s249, 8
      %s251 = scalar_lea.vmem %s6, %s250
      %v252 = vld [vmem:[%s246] sm:$0xff]
      %v253 = vld [vmem:[%s246 + $0x8] sm:$0xff]
      %v254 = vld [vmem:[%s1] sm:$0xff]
      %256 = vset.pattern.permute.xlu0 0
      %257 = vperm.xlu0 %256, %v254
      %v258 = vpop.permute.xlu0 %257
      %v262 = vlaneseq
      %v263 = vshrl.u32 %v262, 7
      %v264 = vsub.s32 0, %v263
      %v265 = vrot.slane %v252, %v264
      %v266 = vlaneseq
      %v267 = vshrl.u32 %v266, 7
      %v268 = vsub.s32 4, %v267
      %v269 = vrot.slane %v252, %v268
      %v270 = vlaneseq
      %v271 = vshrl.u32 %v270, 7
      %v272 = vsub.s32 0, %v271
      %v273 = vrot.slane %v253, %v272
      %v274 = vlaneseq
      %v275 = vshrl.u32 %v274, 7
      %v276 = vsub.s32 4, %v275
      %v277 = vrot.slane %v253, %v276
      %v282 = vlaneseq
      %v283 = vshrl.u32 %v282, 7
      %v284 = vsub.s32 0, %v283
      %v285 = vrot.slane %v265, %v284
      %v286 = vlaneseq
      %v287 = vshrl.u32 %v286, 7
      %v288 = vsub.s32 0, %v287
      %v289 = vrot.slane %v269, %v288
      %v290 = vlaneseq
      %v291 = vshrl.u32 %v290, 7
      %v292 = vsub.s32 0, %v291
      %v293 = vrot.slane %v273, %v292
      %v294 = vlaneseq
      %v295 = vshrl.u32 %v294, 7
      %v296 = vsub.s32 0, %v295
      %v297 = vrot.slane %v277, %v296
      %v298 = vmul.f32 %v258, %v285
      %v299 = vmul.f32 %v258, %v289
      %v300 = vmul.f32 %v258, %v293
      %v301 = vmul.f32 %v258, %v297
      %302 = vset.pattern.permute.xlu0 1
      %303 = vperm.xlu0 %302, %v254
      %v304 = vpop.permute.xlu0 %303
      %v306 = vlaneseq
      %v307 = vshrl.u32 %v306, 7
      %v308 = vsub.s32 1, %v307
      %v309 = vrot.slane %v252, %v308
      %v310 = vlaneseq
      %v311 = vshrl.u32 %v310, 7
      %v312 = vsub.s32 5, %v311
      %v313 = vrot.slane %v252, %v312
      %v314 = vlaneseq
      %v315 = vshrl.u32 %v314, 7
      %v316 = vsub.s32 1, %v315
      %v317 = vrot.slane %v253, %v316
      %v318 = vlaneseq
      %v319 = vshrl.u32 %v318, 7
      %v320 = vsub.s32 5, %v319
      %v321 = vrot.slane %v253, %v320
      %v326 = vlaneseq
      %v327 = vshrl.u32 %v326, 7
      %v328 = vsub.s32 1, %v327
      %v329 = vrot.slane %v309, %v328
      %v330 = vlaneseq
      %v331 = vshrl.u32 %v330, 7
      %v332 = vsub.s32 1, %v331
      %v333 = vrot.slane %v313, %v332
      %v334 = vlaneseq
      %v335 = vshrl.u32 %v334, 7
      %v336 = vsub.s32 1, %v335
      %v337 = vrot.slane %v317, %v336
      %v338 = vlaneseq
      %v339 = vshrl.u32 %v338, 7
      %v340 = vsub.s32 1, %v339
      %v341 = vrot.slane %v321, %v340
      %v342 = vmul.f32 %v304, %v329
      %v343 = vmul.f32 %v304, %v333
      %v344 = vmul.f32 %v304, %v337
      %v345 = vmul.f32 %v304, %v341
      %v346 = vadd.f32 %v298, %v342
      %v347 = vadd.f32 %v299, %v343
      %v348 = vadd.f32 %v300, %v344
      %v349 = vadd.f32 %v301, %v345
      %350 = vset.pattern.permute.xlu0 2
      %351 = vperm.xlu0 %350, %v254
      %v352 = vpop.permute.xlu0 %351
      %v354 = vlaneseq
      %v355 = vshrl.u32 %v354, 7
      %v356 = vsub.s32 2, %v355
      %v357 = vrot.slane %v252, %v356
      %v358 = vlaneseq
      %v359 = vshrl.u32 %v358, 7
      %v360 = vsub.s32 6, %v359
      %v361 = vrot.slane %v252, %v360
      %v362 = vlaneseq
      %v363 = vshrl.u32 %v362, 7
      %v364 = vsub.s32 2, %v363
      %v365 = vrot.slane %v253, %v364
      %v366 = vlaneseq
      %v367 = vshrl.u32 %v366, 7
      %v368 = vsub.s32 6, %v367
      %v369 = vrot.slane %v253, %v368
      %v374 = vlaneseq
      %v375 = vshrl.u32 %v374, 7
      %v376 = vsub.s32 2, %v375
      %v377 = vrot.slane %v357, %v376
      %v378 = vlaneseq
      %v379 = vshrl.u32 %v378, 7
      %v380 = vsub.s32 2, %v379
      %v381 = vrot.slane %v361, %v380
      %v382 = vlaneseq
      %v383 = vshrl.u32 %v382, 7
      %v384 = vsub.s32 2, %v383
      %v385 = vrot.slane %v365, %v384
      %v386 = vlaneseq
      %v387 = vshrl.u32 %v386, 7
      %v388 = vsub.s32 2, %v387
      %v389 = vrot.slane %v369, %v388
      %v390 = vmul.f32 %v352, %v377
      %v391 = vmul.f32 %v352, %v381
      %v392 = vmul.f32 %v352, %v385
      %v393 = vmul.f32 %v352, %v389
      %v394 = vadd.f32 %v346, %v390
      %v395 = vadd.f32 %v347, %v391
      %v396 = vadd.f32 %v348, %v392
      %v397 = vadd.f32 %v349, %v393
      %398 = vset.pattern.permute.xlu0 3
      %399 = vperm.xlu0 %398, %v254
      %v400 = vpop.permute.xlu0 %399
      %v402 = vlaneseq
      %v403 = vshrl.u32 %v402, 7
      %v404 = vsub.s32 3, %v403
      %v405 = vrot.slane %v252, %v404
      %v406 = vlaneseq
      %v407 = vshrl.u32 %v406, 7
      %v408 = vsub.s32 7, %v407
      %v409 = vrot.slane %v252, %v408
      %v410 = vlaneseq
      %v411 = vshrl.u32 %v410, 7
      %v412 = vsub.s32 3, %v411
      %v413 = vrot.slane %v253, %v412
      %v414 = vlaneseq
      %v415 = vshrl.u32 %v414, 7
      %v416 = vsub.s32 7, %v415
      %v417 = vrot.slane %v253, %v416
      %v422 = vlaneseq
      %v423 = vshrl.u32 %v422, 7
      %v424 = vsub.s32 3, %v423
      %v425 = vrot.slane %v405, %v424
      %v426 = vlaneseq
      %v427 = vshrl.u32 %v426, 7
      %v428 = vsub.s32 3, %v427
      %v429 = vrot.slane %v409, %v428
      %v430 = vlaneseq
      %v431 = vshrl.u32 %v430, 7
      %v432 = vsub.s32 3, %v431
      %v433 = vrot.slane %v413, %v432
      %v434 = vlaneseq
      %v435 = vshrl.u32 %v434, 7
      %v436 = vsub.s32 3, %v435
      %v437 = vrot.slane %v417, %v436
      %v438 = vmul.f32 %v400, %v425
      %v439 = vmul.f32 %v400, %v429
      %v440 = vmul.f32 %v400, %v433
      %v441 = vmul.f32 %v400, %v437
      %v442 = vadd.f32 %v394, %v438
      %v443 = vadd.f32 %v395, %v439
      %v444 = vadd.f32 %v396, %v440
      %v445 = vadd.f32 %v397, %v441
      %v446 = vld [vmem:[%s2] sm:$0xff]
      %448 = vset.pattern.permute.xlu0 0
      %449 = vperm.xlu0 %448, %v446
      %v450 = vpop.permute.xlu0 %449
      %v452 = vmul.f32 %v442, %v450
      %v453 = vmul.f32 %v443, %v450
      %v454 = vmul.f32 %v444, %v450
      %v455 = vmul.f32 %v445, %v450
      %v456 = vld [vmem:[%s3] sm:$0xff]
      %458 = vset.pattern.permute.xlu0 0
      %459 = vperm.xlu0 %458, %v456
      %v460 = vpop.permute.xlu0 %459
      %v462 = vadd.f32 %v452, %v460
      %v463 = vadd.f32 %v453, %v460
      %v464 = vadd.f32 %v454, %v460
      %v465 = vadd.f32 %v455, %v460
      %v466 = vmax.f32 %v462, 0.0
      %v467 = vmax.f32 %v463, 0.0
      %v468 = vmax.f32 %v464, 0.0
      %v469 = vmax.f32 %v465, 0.0
      %v470 = vadd.f32 %v466, %v467
      %v471 = vadd.f32 %v470, %v468
      %v472 = vadd.f32 %v471, %v469
      %473 = vadd.xlane.f32.xlu0 %v472
      %v474 = vpop.xlane.xlu0 %473
      %v475 = vrcp.pop 512.0
      %v476 = vmul.f32 %v474, %v475
      %v477 = vld [vmem:[%s4] sm:$0xff]
      %v478 = vmul.f32 %v477, %v476
      %vm479 = vcmask 31744
      %v480 = vsel %vm479, %v478, 0.0
      %v481 = vrot.slane %v480, 4
      %v482 = vadd.f32 %v480, %v481
      %v483 = vrot.slane %v482, 2
      %v484 = vadd.f32 %v482, %v483
      %v485 = vrot.slane %v484, 1
      %v486 = vadd.f32 %v484, %v485
      %v487 = vmax.f32 %v486, 0.0
      %v488 = vld [vmem:[%s5] sm:$0xff]
      %v489 = vmul.f32 %v488, %v487
      %v490 = vsel %vm479, %v489, 0.0
      %491 = vadd.xlane.f32.xlu0 %v490
      %v492 = vpop.xlane.xlu0 %491
      %v493 = vxor.u32 %v492, 2147483648
      %v494 = vmul.f32 %v493, 1.442695
      %v495 = vpow.pop %v494
      %v496 = vadd.f32 %v495, 1.0
      %v497 = vrcp.pop %v496
      %v498 = vmul.f32 1.0, %v497
      %v499 = vmul.f32 %v466, %v498
      %v500 = vmul.f32 %v467, %v498
      %v501 = vmul.f32 %v468, %v498
      %v502 = vmul.f32 %v469, %v498
      %503 = vst [vmem:[%s251] sm:$0xff] %v499
      %504 = vst [vmem:[%s251 + $0x8] sm:$0xff] %v500
      %505 = vst [vmem:[%s251 + $0x10] sm:$0xff] %v501
      %506 = vst [vmem:[%s251 + $0x18] sm:$0xff] %v502
      %p507 = scmp.lt.s32.totalorder %s17, 1
      %s508 = scalar_select %p507, %s17, 1
      %s509 = smul.addr %s508, 4
      %s510 = smul.addr %s509, 8
      %s511 = scalar_lea.vmem %s6, %s510
      // Predicated region
      $region45: #{_lambda_.1} parent=43 // pred_check
        %p512 = pneg %p166
      $region46: #{_lambda_.1} parent=43 // pred_check_branch
        %514 = sbr.rel (%p512) target = $region48
      $region47: #{_lambda_.1} parent=43 // pred_region
        _
      $region48: #{_lambda_.1} parent=43 // pred_fallthru
        _
    $region44: #{_lambda_.1} parent=5 // pred_fallthru
      _
    %p515 = scmp.le.s32.totalorder 2, %s12
    // Predicated region
    $region49: #{_lambda_.1} parent=5 // pred_check
      %p516 = pneg %p515
    $region50: #{_lambda_.1} parent=5 // pred_check_branch
      %518 = sbr.rel (%p516) target = $region52
    $region51: #{_lambda_.1} parent=5 // pred_region
      %s519 = ssub.s32 %s12, 2
      // Predicated region
      $region53: #{_lambda_.1} parent=51 // pred_check
        %p520 = pneg %p172
      $region54: #{_lambda_.1} parent=51 // pred_check_branch
        %522 = sbr.rel (%p520) target = $region56
      $region55: #{_lambda_.1} parent=51 // pred_region
        %p523 = scmp.lt.s32.totalorder %s18, 1
        %s524 = scalar_select %p523, %s18, 1
        %s525 = smul.addr %s524, 4
        %s526 = smul.addr %s525, 8
        %s527 = scalar_lea.vmem %s6, %s526
      $region56: #{_lambda_.1} parent=51 // pred_fallthru
        _
    $region52: #{_lambda_.1} parent=5 // pred_fallthru
      _
  $region6: #{_lambda_.1} parent=0 // loop_footer
    %s16 = sadd.s32 1, %s12
  $region7: #{_lambda_.1} parent=0 // loop_footer_branch
    %11 = sbr.rel target = $region3
  $region8: #{_lambda_.1} parent=0 // loop_exit
    _

</llo_original>
